<compile_context>
chip_gen: v6e
topology: v6e:2x2x1
jax: 0.10.0
libtpu: 0.0.40
codegen_flags: <defaults>
</compile_context>

<pallas_src>
import functools
import math

import jax
import jax.numpy as jnp
from jax import lax
from jax.experimental import pallas as pl
from jax.experimental.pallas import tpu as pltpu


def _fused_conv_pool_kernel(x_ref, w_ref, b_ref, o_ref, *, bb, branch_meta):
    """One batch block: wide matmul + bias + ReLU + per-branch max over time.

    x_ref: (T_common * bb, K_max)  rows ordered as [t * bb + j]  (time-major)
    w_ref: (K_max, C_total)        fused, zero-padded conv weights
    b_ref: (1, C_total)            fused biases
    o_ref: (bb, C_total)           pooled features for this batch block
    branch_meta: tuple of (T_j, col_offset_j, C_j) per conv branch (static).
    """
    y = jnp.dot(x_ref[...], w_ref[...], preferred_element_type=jnp.float32)
    y = jnp.maximum(y + b_ref[...], 0.0)                 # bias + ReLU in f32
    for (t_j, off_j, c_j) in branch_meta:
        acc = y[0:bb, off_j:off_j + c_j]                 # t = 0
        for t in range(1, t_j):                          # static, small loop
            acc = jnp.maximum(acc, y[t * bb:(t + 1) * bb, off_j:off_j + c_j])
        o_ref[:, pl.ds(off_j, c_j)] = acc                # AdaptiveMaxPool1d(1)


def _choose_batch_block(B, T, K, C, itemsize, vmem_budget=8 * 1024 * 1024):
    """Pick BB (batch elements per grid step): == B for small B, else a multiple
    of 8 sized to keep the double-buffered input block + f32 intermediate well
    under the scoped-VMEM budget (conservative enough for v7x's 64 MiB)."""
    if B <= 8:
        return B

    def step_bytes(bb):
        x_bytes = 2 * bb * T * K * itemsize      # pipelined (double-buffered) input
        y_bytes = bb * T * C * 4                 # f32 matmul intermediate
        o_bytes = 2 * bb * C * 4
        w_bytes = K * C * itemsize + C * 4
        return x_bytes + y_bytes + o_bytes + w_bytes

    bb = min(((B + 7) // 8) * 8, 512)
    while bb > 8 and step_bytes(bb) > vmem_budget:
        bb -= 8
    return max(bb, 8)


def cnn_layers_forward(x, weights, biases, *, compute_dtype=jnp.float32):
    """Pallas equivalent of CNN_layers.forward.

    x: (B, glove_dim, L) float32; weights[j]: (C_j, glove_dim, k_j); biases[j]: (C_j,).
    Returns (B, sum(C_j)) float32. `compute_dtype=jnp.bfloat16` halves matmul-input
    traffic on v6e/v7x while keeping f32 accumulation.
    """
    B, D, L = map(int, x.shape)
    ks = [int(w.shape[2]) for w in weights]
    cs = [int(w.shape[0]) for w in weights]
    k_max, k_min = max(ks), min(ks)
    if L < k_max:
        raise ValueError(f"sequence length {L} < max kernel size {k_max}")
    T = L - k_min + 1                 # common number of window positions
    K = D * k_max                     # common flattened window width
    C_total = sum(cs)
    itemsize = jnp.dtype(compute_dtype).itemsize

    # ---------- host-side glue (plain XLA): unfold + weight fusion ----------
    # Zero-pad time so every branch can be evaluated at T positions; invalid
    # positions of longer-kernel branches are excluded from the in-kernel max.
    x_pad = jnp.pad(x, ((0, 0), (0, 0), (0, k_max - k_min)))
    xt = jnp.swapaxes(x_pad, 1, 2)                               # (B, L+pad, D)
    win = jnp.concatenate([xt[:, dk:dk + T, :] for dk in range(k_max)], axis=-1)
    # win[b, t, dk*D + d] = x[b, d, t+dk]                        # (B, T, K)

    BB = _choose_batch_block(B, T, K, C_total, itemsize)
    nb = -(-B // BB)                                             # cdiv
    B_pad = nb * BB
    if B_pad != B:
        win = jnp.pad(win, ((0, B_pad - B), (0, 0), (0, 0)))
    # Time-major within each batch block: row (ib, t, j) <-> batch ib*BB + j.
    x2 = win.reshape(nb, BB, T, K).transpose(0, 2, 1, 3).reshape(nb * T * BB, K)
    x2 = x2.astype(compute_dtype)

    w_cols, branch_meta, off = [], [], 0
    for w, k_j, c_j in zip(weights, ks, cs):
        wt = jnp.transpose(w, (2, 1, 0)).reshape(k_j * D, c_j)   # row = dk*D + d
        if k_j < k_max:
            wt = jnp.pad(wt, ((0, (k_max - k_j) * D), (0, 0)))   # zero extra taps
        w_cols.append(wt)
        branch_meta.append((L - k_j + 1, off, c_j))
        off += c_j
    w_fused = jnp.concatenate(w_cols, axis=1).astype(compute_dtype)     # (K, C_total)
    b_fused = jnp.concatenate(
        [jnp.asarray(b, jnp.float32) for b in biases]).reshape(1, C_total)

    kernel = functools.partial(_fused_conv_pool_kernel, bb=BB,
                               branch_meta=tuple(branch_meta))
    flops = 2 * B_pad * T * K * C_total
    bytes_accessed = (nb * T * BB * K * itemsize + K * C_total * itemsize
                      + C_total * 4 + B_pad * C_total * 4)

    out = pl.pallas_call(
        kernel,
        out_shape=jax.ShapeDtypeStruct((B_pad, C_total), jnp.float32),
        grid=(nb,),
        in_specs=[
            pl.BlockSpec((T * BB, K), lambda i: (i, 0)),
            pl.BlockSpec((K, C_total), lambda i: (0, 0)),
            pl.BlockSpec((1, C_total), lambda i: (0, 0)),
        ],
        out_specs=pl.BlockSpec((BB, C_total), lambda i: (i, 0)),
        compiler_params=pltpu.CompilerParams(dimension_semantics=("parallel",)),
        cost_estimate=pl.CostEstimate(flops=flops, transcendentals=0,
                                      bytes_accessed=bytes_accessed),
    )(x2, w_fused, b_fused)
    return out[:B]


def init_params(key, num_channels, kernel_sizes, glove_dim):
    """Mirror the PyTorch module: kaiming_normal_ weights, zero biases."""
    weights, biases = [], []
    for c, k in zip(num_channels, kernel_sizes):
        key, sub = jax.random.split(key)
        fan_in = glove_dim * k
        std = math.sqrt(2.0 / fan_in)
        w = jax.random.normal(sub, (c, glove_dim, k), dtype=jnp.float32) * std
        b = jnp.zeros((c,), dtype=jnp.float32)      # uniform_(bias, 0, 0) == zeros
        weights.append(w)
        biases.append(b)
    return weights, biases


def _reference_forward(x, weights, biases):
    """Pure-JAX reference (lax.conv) for correctness checking."""
    outs = []
    for w, b in zip(weights, biases):
        y = lax.conv_general_dilated(
            x, w, window_strides=(1,), padding="VALID",
            dimension_numbers=("NCH", "OIH", "NCH"))
        y = y + b[None, :, None]
        y = jnp.maximum(y, 0.0)
        outs.append(jnp.max(y, axis=-1))
    return jnp.concatenate(outs, axis=1)


if __name__ == "__main__":
    # Small shapes consistent with the module:
    #   batch=2, glove_dim (in_channels)=16, sequence length=12,
    #   two conv branches: out_channels=[8, 8], kernel_sizes=[3, 4].
    num_channels = [8, 8]
    kernel_sizes = [3, 4]
    glove_dim = 16
    B, L = 2, 12

    key = jax.random.PRNGKey(0)
    key, xkey = jax.random.split(key)
    x = jax.random.normal(xkey, (B, glove_dim, L), dtype=jnp.float32)
    weights, biases = init_params(key, num_channels, kernel_sizes, glove_dim)

    ref = _reference_forward(x, weights, biases)

    # f32 path (exact vs. reference)
    out = cnn_layers_forward(x, weights, biases)
    out = jax.block_until_ready(out)
    assert out.shape == (B, sum(num_channels)), out.shape
    assert jnp.allclose(out, ref, atol=1e-4, rtol=1e-4), "f32 mismatch vs reference"

    # bf16-input path (v6e/v7x-oriented; f32 MXU accumulation)
    out_bf16 = cnn_layers_forward(x, weights, biases, compute_dtype=jnp.bfloat16)
    out_bf16 = jax.block_until_ready(out_bf16)
    assert jnp.allclose(out_bf16, ref, atol=5e-2, rtol=5e-2), "bf16 mismatch vs reference"

    print("KERNEL_OK")
</pallas_src>

<mosaic_0001>
module attributes {stable_mosaic.version = 11 : i64} {
  func.func @_fused_conv_pool_kernel(%arg0: i32, %arg1: memref<20x64xf32, #tpu.memory_space<vmem>>, %arg2: memref<64x16xf32, #tpu.memory_space<vmem>>, %arg3: memref<1x16xf32, #tpu.memory_space<vmem>>, %arg4: memref<2x16xf32, #tpu.memory_space<vmem>>) attributes {dimension_semantics = [#tpu.dimension_semantics<parallel>], iteration_bounds = array<i64: 1>, scalar_prefetch = 0 : i64, scratch_operands = 0 : i64, tpu.core_type = #tpu.core_type<tc>, window_params = [{transform_indices = @transform_0, window_bounds = array<i64: 20, 64>}, {pipeline_mode = #tpu.pipeline_mode<synchronous>, transform_indices = @transform_1, window_bounds = array<i64: 64, 16>}, {pipeline_mode = #tpu.pipeline_mode<synchronous>, transform_indices = @transform_2, window_bounds = array<i64: 1, 16>}, {transform_indices = @transform_3, window_bounds = array<i64: 2, 16>}]} {
    %c0 = arith.constant 0 : index
    %c0_0 = arith.constant 0 : index
    %0 = vector.load %arg1[%c0, %c0_0] : memref<20x64xf32, #tpu.memory_space<vmem>>, vector<20x64xf32>
    %c0_1 = arith.constant 0 : index
    %c0_2 = arith.constant 0 : index
    %1 = vector.load %arg2[%c0_1, %c0_2] : memref<64x16xf32, #tpu.memory_space<vmem>>, vector<64x16xf32>
    %cst = arith.constant dense<0.000000e+00> : vector<20x16xf32>
    %2 = tpu.matmul %0, %1, %cst {dimension_numbers = #tpu.dot_dimension_numbers<[1], [0], [0], [1], [0, 0, 1, 1], [], []>} : vector<20x64xf32>, vector<64x16xf32>, vector<20x16xf32> -> vector<20x16xf32>
    %c0_3 = arith.constant 0 : index
    %c0_4 = arith.constant 0 : index
    %3 = vector.load %arg3[%c0_3, %c0_4] : memref<1x16xf32, #tpu.memory_space<vmem>>, vector<1x16xf32>
    %4 = vector.broadcast %3 : vector<1x16xf32> to vector<20x16xf32>
    %5 = arith.addf %2, %4 : vector<20x16xf32>
    %cst_5 = arith.constant 0.000000e+00 : f32
    %6 = vector.broadcast %cst_5 : f32 to vector<20x16xf32>
    %7 = arith.maximumf %5, %6 : vector<20x16xf32>
    %8 = vector.extract_strided_slice %7 {offsets = [0, 0], sizes = [2, 8], strides = [1, 1]} : vector<20x16xf32> to vector<2x8xf32>
    %9 = vector.extract_strided_slice %7 {offsets = [2, 0], sizes = [2, 8], strides = [1, 1]} : vector<20x16xf32> to vector<2x8xf32>
    %10 = arith.maximumf %8, %9 : vector<2x8xf32>
    %11 = vector.extract_strided_slice %7 {offsets = [4, 0], sizes = [2, 8], strides = [1, 1]} : vector<20x16xf32> to vector<2x8xf32>
    %12 = arith.maximumf %10, %11 : vector<2x8xf32>
    %13 = vector.extract_strided_slice %7 {offsets = [6, 0], sizes = [2, 8], strides = [1, 1]} : vector<20x16xf32> to vector<2x8xf32>
    %14 = arith.maximumf %12, %13 : vector<2x8xf32>
    %15 = vector.extract_strided_slice %7 {offsets = [8, 0], sizes = [2, 8], strides = [1, 1]} : vector<20x16xf32> to vector<2x8xf32>
    %16 = arith.maximumf %14, %15 : vector<2x8xf32>
    %17 = vector.extract_strided_slice %7 {offsets = [10, 0], sizes = [2, 8], strides = [1, 1]} : vector<20x16xf32> to vector<2x8xf32>
    %18 = arith.maximumf %16, %17 : vector<2x8xf32>
    %19 = vector.extract_strided_slice %7 {offsets = [12, 0], sizes = [2, 8], strides = [1, 1]} : vector<20x16xf32> to vector<2x8xf32>
    %20 = arith.maximumf %18, %19 : vector<2x8xf32>
    %21 = vector.extract_strided_slice %7 {offsets = [14, 0], sizes = [2, 8], strides = [1, 1]} : vector<20x16xf32> to vector<2x8xf32>
    %22 = arith.maximumf %20, %21 : vector<2x8xf32>
    %23 = vector.extract_strided_slice %7 {offsets = [16, 0], sizes = [2, 8], strides = [1, 1]} : vector<20x16xf32> to vector<2x8xf32>
    %24 = arith.maximumf %22, %23 : vector<2x8xf32>
    %25 = vector.extract_strided_slice %7 {offsets = [18, 0], sizes = [2, 8], strides = [1, 1]} : vector<20x16xf32> to vector<2x8xf32>
    %26 = arith.maximumf %24, %25 : vector<2x8xf32>
    %c0_6 = arith.constant 0 : index
    %c0_7 = arith.constant 0 : index
    %27 = vector.load %arg4[%c0_6, %c0_7] : memref<2x16xf32, #tpu.memory_space<vmem>>, vector<2x8xf32>
    tpu.vector_store %arg4[%c0_6, %c0_7], %26 {strides = array<i32>} : memref<2x16xf32, #tpu.memory_space<vmem>>, vector<2x8xf32>,
    %28 = vector.extract_strided_slice %7 {offsets = [0, 8], sizes = [2, 8], strides = [1, 1]} : vector<20x16xf32> to vector<2x8xf32>
    %29 = vector.extract_strided_slice %7 {offsets = [2, 8], sizes = [2, 8], strides = [1, 1]} : vector<20x16xf32> to vector<2x8xf32>
    %30 = arith.maximumf %28, %29 : vector<2x8xf32>
    %31 = vector.extract_strided_slice %7 {offsets = [4, 8], sizes = [2, 8], strides = [1, 1]} : vector<20x16xf32> to vector<2x8xf32>
    %32 = arith.maximumf %30, %31 : vector<2x8xf32>
    %33 = vector.extract_strided_slice %7 {offsets = [6, 8], sizes = [2, 8], strides = [1, 1]} : vector<20x16xf32> to vector<2x8xf32>
    %34 = arith.maximumf %32, %33 : vector<2x8xf32>
    %35 = vector.extract_strided_slice %7 {offsets = [8, 8], sizes = [2, 8], strides = [1, 1]} : vector<20x16xf32> to vector<2x8xf32>
    %36 = arith.maximumf %34, %35 : vector<2x8xf32>
    %37 = vector.extract_strided_slice %7 {offsets = [10, 8], sizes = [2, 8], strides = [1, 1]} : vector<20x16xf32> to vector<2x8xf32>
    %38 = arith.maximumf %36, %37 : vector<2x8xf32>
    %39 = vector.extract_strided_slice %7 {offsets = [12, 8], sizes = [2, 8], strides = [1, 1]} : vector<20x16xf32> to vector<2x8xf32>
    %40 = arith.maximumf %38, %39 : vector<2x8xf32>
    %41 = vector.extract_strided_slice %7 {offsets = [14, 8], sizes = [2, 8], strides = [1, 1]} : vector<20x16xf32> to vector<2x8xf32>
    %42 = arith.maximumf %40, %41 : vector<2x8xf32>
    %43 = vector.extract_strided_slice %7 {offsets = [16, 8], sizes = [2, 8], strides = [1, 1]} : vector<20x16xf32> to vector<2x8xf32>
    %44 = arith.maximumf %42, %43 : vector<2x8xf32>
    %c0_8 = arith.constant 0 : index
    %c8 = arith.constant 8 : index
    %45 = vector.load %arg4[%c0_8, %c8] : memref<2x16xf32, #tpu.memory_space<vmem>>, vector<2x8xf32>
    tpu.vector_store %arg4[%c0_8, %c8], %44 {strides = array<i32>} : memref<2x16xf32, #tpu.memory_space<vmem>>, vector<2x8xf32>,
    return
  }
  func.func @transform_0(%arg0: i32) -> (i32, i32) {
    %c0_i32 = arith.constant 0 : i32
    %c0_i32_0 = arith.constant 0 : i32
    return %arg0, %c0_i32 : i32, i32
  }
  func.func @transform_1(%arg0: i32) -> (i32, i32) {
    %c0_i32 = arith.constant 0 : i32
    %c0_i32_0 = arith.constant 0 : i32
    %c0_i32_1 = arith.constant 0 : i32
    return %c0_i32, %c0_i32_0 : i32, i32
  }
  func.func @transform_2(%arg0: i32) -> (i32, i32) {
    %c0_i32 = arith.constant 0 : i32
    %c0_i32_0 = arith.constant 0 : i32
    %c0_i32_1 = arith.constant 0 : i32
    return %c0_i32, %c0_i32_0 : i32, i32
  }
  func.func @transform_3(%arg0: i32) -> (i32, i32) {
    %c0_i32 = arith.constant 0 : i32
    %c0_i32_0 = arith.constant 0 : i32
    return %arg0, %c0_i32 : i32, i32
  }
}

</mosaic_0001>

<llo_original>
// kernel: tpu_custom_call.1
$region0: #{tpu_custom_call.1}
  #allocation0 [shape = 'u32[]', space=smem, size = 0x4, offset = 0x4, fixed_abs, tag = 'smem constant byte address 0x4 - core index']
  #allocation1 [shape = 'u32[144,128]{1,0:T(1,128)}', space=vmem, size = 0x12000, scoped, tag = 'internal scratch']
  %s0 = inlined_call_operand.vmem [shape: f32[20,64], index: 0, kind: input, shape index: {}]
  %s1 = inlined_call_operand.vmem [shape: f32[64,16], index: 1, kind: input, shape index: {}]
  %s2 = inlined_call_operand.vmem [shape: f32[1,16], index: 2, kind: input, shape index: {}]
  %s3 = inlined_call_operand.hbm [shape: f32[2,16], index: 3, kind: output, shape index: {}]
  %s4 = sld [smem:[#allocation0]]
  $region22: #{tpu_custom_call.1} parent=0
    _
  %s6 = ssub.s32 1, %s4
  %s7 = scalar_select 0, %s6, %s4
  $region1: #{tpu_custom_call.1} parent=0
    #allocation2 [shape = 'u8[1024]{0}', space=vmem, size = 0x400, scoped, tag = 'output window, operand 0, single buffered']
    #allocation3 [shape = 's32[1]{0}', space=sflag, size = 0x4, scoped, tag = 'scoped memory for tpu_custom_call.1']
    %8 = vsyncpa [#allocation3], 0
    // Predicated region
    $region2: #{tpu_custom_call.1} parent=1 // pred_check
      _
    $region3: #{tpu_custom_call.1} parent=1 // pred_check_branch
      %10 = sbr.rel (0) target = $region5
    $region4: #{tpu_custom_call.1} parent=1 // pred_region
      _
    $region5: #{tpu_custom_call.1} parent=1 // pred_fallthru
      _
    // Predicated region
    $region6: #{tpu_custom_call.1} parent=1 // pred_check
      _
    $region7: #{tpu_custom_call.1} parent=1 // pred_check_branch
      %12 = sbr.rel (0) target = $region9
    $region8: #{tpu_custom_call.1} parent=1 // pred_region
      _
    $region9: #{tpu_custom_call.1} parent=1 // pred_fallthru
      _
    // Predicated region
    $region10: #{tpu_custom_call.1} parent=1 // pred_check
      _
    $region11: #{tpu_custom_call.1} parent=1 // pred_check_branch
      %14 = sbr.rel (0) target = $region13
    $region12: #{tpu_custom_call.1} parent=1 // pred_region
      _
    $region13: #{tpu_custom_call.1} parent=1 // pred_fallthru
      _
    %v15 = vld [vmem:[%s0] sm:$0xff]
    %v16 = vld [vmem:[%s0 + $0x8] sm:$0xff]
    %v17 = vld [vmem:[%s0 + $0x10] sm:$0xf]
    %v18 = vld [vmem:[%s1] sm:$0xff]
    %v19 = vld [vmem:[%s1 + $0x8] sm:$0xff]
    %v20 = vld [vmem:[%s1 + $0x10] sm:$0xff]
    %v21 = vld [vmem:[%s1 + $0x18] sm:$0xff]
    %v22 = vld [vmem:[%s1 + $0x20] sm:$0xff]
    %v23 = vld [vmem:[%s1 + $0x28] sm:$0xff]
    %v24 = vld [vmem:[%s1 + $0x30] sm:$0xff]
    %v25 = vld [vmem:[%s1 + $0x38] sm:$0xff]
    %v26 = vld [vmem:[%s2] sm:$0x1]
    %v28 = vlaneseq
    %v29 = vshrl.u32 %v28, 7
    %v30 = vsub.s32 0, %v29
    %v31 = vrot.slane %v26, %v30
    %vm33 = vcmask 523264
    %v35 = vsel %vm33, %v15, 0
    %v38 = vsel %vm33, %v16, 0
    %v41 = vsel %vm33, %v17, 0
    %43 = vmatprep.subr.mxu0 0.0
    %44 = vmatpush1.msra.mxu0 0.0
    %45 = vmatprep.subr.mxu0 0.0
    %46 = vmatpush1.msra.mxu0 0.0
    %47 = vmatprep.subr.mxu0 0.0
    %48 = vmatpush1.msra.mxu0 0.0
    %49 = vmatprep.subr.mxu0 0.0
    %50 = vmatpush1.msra.mxu0 0.0
    %51 = vmatprep.subr.mxu0 0.0
    %52 = vmatpush1.msra.mxu0 0.0
    %53 = vmatprep.subr.mxu0 0.0
    %54 = vmatpush1.msra.mxu0 0.0
    %55 = vmatprep.subr.mxu0 0.0
    %56 = vmatpush1.msra.mxu0 0.0
    %57 = vmatprep.subr.mxu0 0.0
    %58 = vmatpush1.msra.mxu0 0.0
    %59 = vmatprep.subr.mxu0 0.0
    %60 = vmatpush1.msra.mxu0 %v25
    %61 = vmatprep.subr.mxu0 0.0
    %62 = vmatpush1.msra.mxu0 %v24
    %63 = vmatprep.subr.mxu0 0.0
    %64 = vmatpush1.msra.mxu0 %v23
    %65 = vmatprep.subr.mxu0 0.0
    %66 = vmatpush1.msra.mxu0 %v22
    %67 = vmatprep.subr.mxu0 0.0
    %68 = vmatpush1.msra.mxu0 %v21
    %69 = vmatprep.subr.mxu0 0.0
    %70 = vmatpush1.msra.mxu0 %v20
    %71 = vmatprep.subr.mxu0 0.0
    %72 = vmatpush1.msra.mxu0 %v19
    %73 = vmatprep.subr.mxu0 0.0
    %74 = vmatpush1.msra.mxu0 %v18
    %75 = vmatprep.subr.mxu0 0.0
    %76 = vmatpush2.msra.mxu0 0.0
    %77 = vmatprep.subr.mxu0 0.0
    %78 = vmatpush2.msra.mxu0 0.0
    %79 = vmatprep.subr.mxu0 0.0
    %80 = vmatpush2.msra.mxu0 0.0
    %81 = vmatprep.subr.mxu0 0.0
    %82 = vmatpush2.msra.mxu0 0.0
    %83 = vmatprep.subr.mxu0 0.0
    %84 = vmatpush2.msra.mxu0 0.0
    %85 = vmatprep.subr.mxu0 0.0
    %86 = vmatpush2.msra.mxu0 0.0
    %87 = vmatprep.subr.mxu0 0.0
    %88 = vmatpush2.msra.mxu0 0.0
    %89 = vmatprep.subr.mxu0 0.0
    %90 = vmatpush2.msra.mxu0 0.0
    %91 = vmatprep.subr.mxu0 0.0
    %92 = vmatpush2.msra.mxu0 0.0
    %93 = vmatprep.subr.mxu0 0.0
    %94 = vmatpush2.msra.mxu0 0.0
    %95 = vmatprep.subr.mxu0 0.0
    %96 = vmatpush2.msra.mxu0 0.0
    %97 = vmatprep.subr.mxu0 0.0
    %98 = vmatpush2.msra.mxu0 0.0
    %99 = vmatprep.subr.mxu0 0.0
    %100 = vmatpush2.msra.mxu0 0.0
    %101 = vmatprep.subr.mxu0 0.0
    %102 = vmatpush2.msra.mxu0 0.0
    %103 = vmatprep.subr.mxu0 0.0
    %104 = vmatpush2.msra.mxu0 0.0
    %105 = vmatprep.subr.mxu0 0.0
    %106 = vmatpush2.msra.mxu0 0.0
    %107 = vmatprep.mubr.f32.mxu0 0.0
    %108 = vmatmul.mubr.f32.gmra.mxu0 %v35
    %v109 = vpop.f32.mrf.mxu0
    %v110 = vadd.f32 %v31, %v109
    %v111 = vpop.f32.mrf.mxu0
    %112 = vmatprep.mubr.f32.mxu0 0.0
    %113 = vmatmul.mubr.f32.gmra.mxu0 %v38
    %v114 = vpop.f32.mrf.mxu0
    %v115 = vadd.f32 %v31, %v114
    %v116 = vpop.f32.mrf.mxu0
    %117 = vmatprep.mubr.f32.mxu0 0.0
    %118 = vmatmul.mubr.f32.gmra.mxu0 %v41
    %v119 = vpop.f32.mrf.mxu0
    %v120 = vadd.f32 %v31, %v119
    %v121 = vpop.f32.mrf.mxu0
    %122 = vdwg.mxu0
    %v123 = vmax.f32 %v110, 0.0
    %v124 = vmax.f32 %v115, 0.0
    %v125 = vmax.f32 %v120, 0.0
    %v127 = vrot.slane %v123, 2
    %v129 = vmax.f32 %v123, %v127
    %v130 = vrot.slane %v123, 4
    %v132 = vmax.f32 %v129, %v130
    %v133 = vrot.slane %v123, 6
    %v135 = vmax.f32 %v132, %v133
    %v136 = vmax.f32 %v135, %v124
    %v138 = vrot.slane %v124, 2
    %v140 = vmax.f32 %v136, %v138
    %v141 = vrot.slane %v124, 4
    %v143 = vmax.f32 %v140, %v141
    %v144 = vrot.slane %v124, 6
    %v146 = vmax.f32 %v143, %v144
    %v147 = vmax.f32 %v146, %v125
    %v149 = vrot.slane %v125, 2
    %v151 = vmax.f32 %v147, %v149
    %vm152 = vcmask 58368
    %153 = vst.msk [vmem:[#allocation2] sm:$0x3] %vm152, %v151
    %vm154 = vcmask 123968
    %155 = vst.msk [vmem:[#allocation2] sm:$0x3] %vm154, %v147
    // Predicated region
    $region14: #{tpu_custom_call.1} parent=1 // pred_check
      _
    $region15: #{tpu_custom_call.1} parent=1 // pred_check_branch
      %157 = sbr.rel (0) target = $region17
    $region16: #{tpu_custom_call.1} parent=1 // pred_region
      %s159 = ssub.s32 32, 32
      %160 = vsyncadd [#allocation3], %s159
      %s162 = sshll.u32 [#allocation2], 4
      %s163 = int_to_ptr.vmem [resolvable:$true] %s162
      %165 = dma.vmem_to_hbm [thread:$0]  %s163, 32, %s3, [#allocation3]
    $region17: #{tpu_custom_call.1} parent=1 // pred_fallthru
      _
    // Predicated region
    $region18: #{tpu_custom_call.1} parent=1 // pred_check
      _
    $region19: #{tpu_custom_call.1} parent=1 // pred_check_branch
      %167 = sbr.rel (0) target = $region21
    $region20: #{tpu_custom_call.1} parent=1 // pred_region
      %168 = dma.done [#allocation3], 32
    $region21: #{tpu_custom_call.1} parent=1 // pred_fallthru
      _
    %169 = vsyncpa [#allocation3], 1

</llo_original>
